<compile_context>
chip_gen: v6e
topology: v6e:2x2x1
jax: 0.10.0
libtpu: 0.0.40
codegen_flags: <defaults>
</compile_context>

<pallas_src>
import functools

import jax
import jax.numpy as jnp
import numpy as np
from jax.experimental import pallas as pl
from jax.experimental.pallas import tpu as pltpu

BN_EPS = 1e-5


def _round_up(v, m):
    return ((v + m - 1) // m) * m


# ----------------------------------------------------------------------------
# Pallas kernel: whole generator forward for one batch tile.
# ----------------------------------------------------------------------------
def _generator_kernel(n_hidden, skip, hidden_pad, out_dim, segments,
                      use_seg_matmul, *refs):
    # refs order:
    #   x_ref (bf16), bias_ref (packed f32, one row per Linear),
    #   [seg_proj_ref (bf16, only if use_seg_matmul)],
    #   per hidden layer i: W_main, (W_skip if skip and i > 0)   [bf16, BN-folded, lane-padded]
    #   final layer:        W_main, (W_skip if skip and n_hidden > 0)
    #   out_ref (f32, un-padded width out_dim)
    x_ref, bias_ref = refs[0], refs[1]
    idx = 2
    seg_proj_ref = None
    if use_seg_matmul:
        seg_proj_ref = refs[idx]
        idx += 1
    out_ref = refs[-1]
    wit = iter(refs[idx:-1])

    dmax = bias_ref.shape[1]

    x_bf = x_ref[...]            # (tile_b, E) bf16 -- MXU input dtype, no in-kernel cast
    skip_bf = x_bf               # reused for every skip matmul (no copy)
    h = x_bf

    # Hidden blocks: (Linear + BN folded) -> (Dropout = id) -> ReLU.
    # All widths are padded to multiples of 128 -> lane-dense VPU / EUP work.
    for i in range(n_hidden):
        w = next(wit)[...]
        y = jnp.dot(h, w, preferred_element_type=jnp.float32)
        if skip and i > 0:
            ws = next(wit)[...]
            y = y + jnp.dot(skip_bf, ws, preferred_element_type=jnp.float32)
        b_full = bias_ref[i:i + 1, :]                  # (1, dmax) f32
        b_row = b_full if hidden_pad[i] == dmax else b_full[:, :hidden_pad[i]]
        y = y + b_row
        h = jnp.maximum(y, 0.0).astype(jnp.bfloat16)

    # Final Linear (skip concat done as split matmul), un-padded output width.
    wf = next(wit)[...]
    y = jnp.dot(h, wf, preferred_element_type=jnp.float32)
    if skip and n_hidden > 0:
        wfs = next(wit)[...]
        y = y + jnp.dot(skip_bf, wfs, preferred_element_type=jnp.float32)
    bf_full = bias_ref[n_hidden:n_hidden + 1, :]
    bf_row = bf_full if out_dim == dmax else bf_full[:, :out_dim]
    y = y + bf_row

    # Discrete-column softmax over the static segments [a, b).
    if segments:
        neg_inf = jnp.float32(-jnp.inf)
        col = jax.lax.broadcasted_iota(jnp.int32, (1, out_dim), 1)   # row mask only
        masks = [(col >= a) & (col < b) for (a, b) in segments]
        disc_mask = masks[0]
        for m in masks[1:]:
            disc_mask = disc_mask | m

        # Pass 1: per-lane running max map (one XLU reduce per segment).
        max_map = jnp.zeros_like(y)
        for m in masks:
            seg_max = jnp.max(jnp.where(m, y, neg_inf), axis=1, keepdims=True)
            max_map = jnp.where(m, seg_max, max_map)

        # Pass 2: ONE full-width exp; exp(-inf)=0 outside the discrete region.
        e = jnp.exp(jnp.where(disc_mask, y - max_map, neg_inf))

        # Pass 3: per-segment denominators broadcast back to lanes.
        if use_seg_matmul:
            # Many segments: one tiny MXU pass against the static projector
            # P[i, j] = 1 if lanes i and j are in the same segment.
            denom = jnp.dot(e.astype(jnp.bfloat16), seg_proj_ref[...],
                            preferred_element_type=jnp.float32)
            denom = denom + jnp.where(disc_mask, 0.0, 1.0)   # avoid 0/0 off-region
        else:
            # Few segments: exact f32 cross-lane reductions.
            denom = jnp.ones_like(y)
            for m in masks:
                s = jnp.sum(jnp.where(m, e, 0.0), axis=1, keepdims=True)
                denom = jnp.where(m, s, denom)

        # Exact divide so per-segment probabilities sum to 1.
        y = jnp.where(disc_mask, e / denom, y)

    out_ref[...] = y.astype(out_ref.dtype)      # (tile_b, out_dim) store


# ----------------------------------------------------------------------------
# Parameter construction (torch-style raw params, deterministic).
# ----------------------------------------------------------------------------
def init_params(key, architecture, skip):
    n_hidden = len(architecture) - 2
    E = architecture[0]
    params = []
    kctr = [0]

    def nk():
        kctr[0] += 1
        return jax.random.fold_in(key, kctr[0])

    for i in range(n_hidden):
        in_dim, out_dim = architecture[i], architecture[i + 1]
        params.append(0.1 * jax.random.normal(nk(), (in_dim, out_dim), jnp.float32))
        if skip and i > 0:
            params.append(0.1 * jax.random.normal(nk(), (E, out_dim), jnp.float32))
        params.append(0.05 * jax.random.normal(nk(), (1, out_dim), jnp.float32))       # bias
        params.append(1.0 + 0.1 * jax.random.normal(nk(), (1, out_dim), jnp.float32))  # bn gamma
        params.append(0.05 * jax.random.normal(nk(), (1, out_dim), jnp.float32))       # bn beta
        params.append(0.1 * jax.random.normal(nk(), (1, out_dim), jnp.float32))        # running mean
        params.append(0.5 + jax.random.uniform(nk(), (1, out_dim), jnp.float32))       # running var (>0)

    in_dim, out_dim = architecture[-2], architecture[-1]
    params.append(0.1 * jax.random.normal(nk(), (in_dim, out_dim), jnp.float32))
    if skip and n_hidden > 0:
        params.append(0.1 * jax.random.normal(nk(), (E, out_dim), jnp.float32))
    params.append(0.05 * jax.random.normal(nk(), (1, out_dim), jnp.float32))
    return params


# ----------------------------------------------------------------------------
# BN folding + bf16 cast + 128-lane padding of hidden widths + bias packing.
# ----------------------------------------------------------------------------
def _prepare_params(params, architecture, skip):
    n_hidden = len(architecture) - 2
    E = architecture[0]
    hidden_pad = [_round_up(architecture[i + 1], 128) for i in range(n_hidden)]
    it = iter(params)
    weights, bias_rows = [], []

    prev_pad = E                                  # width of the activation feeding layer i
    for i in range(n_hidden):
        w = next(it)                              # (in_dim, out_i)
        ws = next(it) if (skip and i > 0) else None
        b, g, be, m, v = next(it), next(it), next(it), next(it), next(it)
        scale = g * jax.lax.rsqrt(v + BN_EPS)     # fold BN (eval) into the Linear
        b_fold = (b - m) * scale + be
        w = w * scale
        out_i = architecture[i + 1]
        pad_out = hidden_pad[i] - out_i
        pad_in = prev_pad - w.shape[0]            # match previous padded activation width
        weights.append(jnp.pad(w, ((0, pad_in), (0, pad_out))).astype(jnp.bfloat16))
        if ws is not None:
            weights.append(jnp.pad(ws * scale, ((0, 0), (0, pad_out))).astype(jnp.bfloat16))
        bias_rows.append(jnp.pad(b_fold, ((0, 0), (0, pad_out))))
        prev_pad = hidden_pad[i]

    wf = next(it)
    wfs = next(it) if (skip and n_hidden > 0) else None
    bf = next(it)
    pad_in = prev_pad - wf.shape[0]
    weights.append(jnp.pad(wf, ((0, pad_in), (0, 0))).astype(jnp.bfloat16))
    if wfs is not None:
        weights.append(wfs.astype(jnp.bfloat16))
    bias_rows.append(bf)

    dmax = max(r.shape[1] for r in bias_rows)
    bias_mat = jnp.zeros((n_hidden + 1, dmax), jnp.float32)
    for i, r in enumerate(bias_rows):
        bias_mat = bias_mat.at[i, :r.shape[1]].set(r[0])
    return weights, bias_mat, tuple(hidden_pad)


# ----------------------------------------------------------------------------
# Chip-aware tiling (no forced grid split on single-TC chips).
# ----------------------------------------------------------------------------
def _tensorcore_count():
    try:
        info = pltpu.get_tpu_info()
        for attr in ("num_cores", "core_count", "tensorcore_count", "num_tensorcores"):
            v = getattr(info, attr, None)
            if isinstance(v, int) and v > 0:
                return v
    except Exception:
        pass
    return 1      # v5e / v6e (and safe fallback)


def _auto_tile(n, n_cores=1, max_tile=512):
    # Batch rows map to sublanes: only multiple-of-8 matters (not MXU width).
    # Single-TC chips: one grid step when the batch fits the tile.
    # Multi-TC (v7x): make the grid extent a multiple of the core count.
    # max_tile is worth a per-generation {256, 512, 1024} sweep for large N.
    n8 = max(8, _round_up(n, 8))
    if n_cores > 1:
        n8 = max(8, _round_up(-(-n8 // n_cores), 8))
    return min(max_tile, n8)


def _vmem_limit_bytes(tile_b, E, out_dim, weights, bias_mat, hidden_pad):
    work_w = max(list(hidden_pad) + [out_dim, E])
    wbytes = sum(int(w.size) * 2 for w in weights)
    bbytes = int(bias_mat.size) * 4
    xbytes = tile_b * E * 2
    obytes = tile_b * out_dim * 4
    work = tile_b * work_w * 4 * 4                   # a few f32 intermediates
    est = 2 * (xbytes + obytes + wbytes + bbytes) + work
    if est <= (12 << 20):
        return None                                   # default scoped VMEM is plenty
    return min(int(est * 3 // 2), 96 << 20)


# ----------------------------------------------------------------------------
# Wrapper: batch-tiled pallas_call with all (folded, packed) params resident.
# ----------------------------------------------------------------------------
def potnet_generator_forward(x, params, architecture, skip, num_disc_cols,
                             disc_idx, tile_b=None, seg_matmul_threshold=8):
    E = architecture[0]
    out_dim = architecture[-1]
    n_hidden = len(architecture) - 2

    weights, bias_mat, hidden_pad = _prepare_params(params, architecture, skip)

    # x is only ever an MXU input -> pass bf16 (halves input DMA + VMEM).
    x = x.reshape(-1, E).astype(jnp.bfloat16)        # x.view(-1, embedding_dim)
    N = x.shape[0]
    n_cores = _tensorcore_count()
    if tile_b is None:
        tile_b = _auto_tile(N, n_cores)
    tile_b = max(8, _round_up(tile_b, 8))
    n_pad = pl.cdiv(N, tile_b) * tile_b
    if n_pad != N:
        x = jnp.pad(x, ((0, n_pad - N), (0, 0)))

    # Static softmax segments (mirrors the torch loop; c=0 slice is empty).
    segments = ()
    if num_disc_cols > 0 and disc_idx is not None:
        segments = tuple(
            (int(disc_idx[c - 1]), int(disc_idx[c]))
            for c in range(1, len(disc_idx))
            if int(disc_idx[c]) > int(disc_idx[c - 1]))
    use_seg_matmul = len(segments) >= seg_matmul_threshold

    extra_inputs, extra_specs = [], []
    if use_seg_matmul:
        proj = np.zeros((out_dim, out_dim), np.float32)
        for a, b in segments:
            proj[a:b, a:b] = 1.0
        proj = jnp.asarray(proj, jnp.bfloat16)
        extra_inputs.append(proj)
        extra_specs.append(pl.BlockSpec(proj.shape, lambda i: (0, 0)))

    kernel = functools.partial(_generator_kernel, n_hidden, skip, hidden_pad,
                               out_dim, segments, use_seg_matmul)

    in_specs = [pl.BlockSpec((tile_b, E), lambda i: (i, 0)),
                pl.BlockSpec(bias_mat.shape, lambda i: (0, 0))]
    in_specs += extra_specs
    for w in weights:
        in_specs.append(pl.BlockSpec(w.shape, lambda i: (0, 0)))
    # Un-padded output: block last dim equals the full array dim -> only
    # out_dim columns of HBM write traffic, no wrapper-side slice copy.
    out_spec = pl.BlockSpec((tile_b, out_dim), lambda i: (i, 0))

    vmem_limit = _vmem_limit_bytes(tile_b, E, out_dim, weights, bias_mat, hidden_pad)
    cp_kwargs = dict(dimension_semantics=("parallel",))
    if vmem_limit is not None:
        cp_kwargs["vmem_limit_bytes"] = vmem_limit

    out = pl.pallas_call(
        kernel,
        out_shape=jax.ShapeDtypeStruct((n_pad, out_dim), jnp.float32),
        grid_spec=pltpu.PrefetchScalarGridSpec(
            num_scalar_prefetch=0,
            grid=(n_pad // tile_b,),
            in_specs=in_specs,
            out_specs=out_spec,
        ),
        compiler_params=pltpu.CompilerParams(**cp_kwargs),
    )(x, bias_mat, *extra_inputs, *weights)

    return out[:N] if n_pad != N else out


# ----------------------------------------------------------------------------
# Pure-JAX f32 reference (same eval-mode semantics, raw un-folded params).
# ----------------------------------------------------------------------------
def reference_forward(x, params, architecture, skip, disc_idx):
    n_hidden = len(architecture) - 2
    E = architecture[0]
    x = x.reshape(-1, E).astype(jnp.float32)
    skip_in = x
    it = iter(params)
    for i in range(n_hidden):
        w = next(it)
        if skip and i > 0:
            x = jnp.concatenate([x, skip_in], axis=-1)
            w = jnp.concatenate([w, next(it)], axis=0)
        b, g, be, m, v = next(it), next(it), next(it), next(it), next(it)
        y = x @ w + b
        y = (y - m) / jnp.sqrt(v + BN_EPS) * g + be
        x = jnp.maximum(y, 0.0)
    wf = next(it)
    if skip and n_hidden > 0:
        x = jnp.concatenate([x, skip_in], axis=-1)
        wf = jnp.concatenate([wf, next(it)], axis=0)
    bf = next(it)
    y = np.array(x @ wf + bf)
    if disc_idx is not None:
        for c in range(1, len(disc_idx)):
            a, bnd = disc_idx[c - 1], disc_idx[c]
            y[:, a:bnd] = np.array(jax.nn.softmax(jnp.asarray(y[:, a:bnd]), axis=1))
    return y


if __name__ == "__main__":
    # Small config consistent with the module:
    #   embedding_dim=32, architecture=[32, 64, 48, 24], output_dim=24
    #   num_disc_cols=2, disc_col_category_idx=[0, 4, 8], skip=True
    embedding_dim = 32
    output_dim = 24
    architecture = [32, 64, 48, 24]
    disc_col_category_idx = [0, 4, 8]
    num_disc_cols = 2
    skip = True
    batch = 16

    key = jax.random.PRNGKey(0)
    kx, kp = jax.random.split(key)
    x = jax.random.normal(kx, (batch, embedding_dim), jnp.float32)
    params = init_params(kp, architecture, skip)

    out = potnet_generator_forward(
        x, params, architecture, skip, num_disc_cols, disc_col_category_idx)
    out = jax.block_until_ready(out)

    ref = reference_forward(x, params, architecture, skip, disc_col_category_idx)
    # bf16 weights/activations on the MXU path -> slightly looser tolerance.
    np.testing.assert_allclose(np.asarray(out), ref, rtol=5e-2, atol=5e-3)

    print("KERNEL_OK")
</pallas_src>

<mosaic_0001>
module attributes {stable_mosaic.version = 11 : i64} {
  func.func @_generator_kernel(%arg0: i32, %arg1: memref<16x32xbf16, #tpu.memory_space<vmem>>, %arg2: memref<3x128xf32, #tpu.memory_space<vmem>>, %arg3: memref<32x128xbf16, #tpu.memory_space<vmem>>, %arg4: memref<128x128xbf16, #tpu.memory_space<vmem>>, %arg5: memref<32x128xbf16, #tpu.memory_space<vmem>>, %arg6: memref<128x24xbf16, #tpu.memory_space<vmem>>, %arg7: memref<32x24xbf16, #tpu.memory_space<vmem>>, %arg8: memref<16x24xf32, #tpu.memory_space<vmem>>) attributes {dimension_semantics = [#tpu.dimension_semantics<parallel>], iteration_bounds = array<i64: 1>, scalar_prefetch = 0 : i64, scratch_operands = 0 : i64, tpu.core_type = #tpu.core_type<tc>, window_params = [{transform_indices = @transform_0, window_bounds = array<i64: 16, 32>}, {pipeline_mode = #tpu.pipeline_mode<synchronous>, transform_indices = @transform_1, window_bounds = array<i64: 3, 128>}, {pipeline_mode = #tpu.pipeline_mode<synchronous>, transform_indices = @transform_2, window_bounds = array<i64: 32, 128>}, {pipeline_mode = #tpu.pipeline_mode<synchronous>, transform_indices = @transform_3, window_bounds = array<i64: 128, 128>}, {pipeline_mode = #tpu.pipeline_mode<synchronous>, transform_indices = @transform_4, window_bounds = array<i64: 32, 128>}, {pipeline_mode = #tpu.pipeline_mode<synchronous>, transform_indices = @transform_5, window_bounds = array<i64: 128, 24>}, {pipeline_mode = #tpu.pipeline_mode<synchronous>, transform_indices = @transform_6, window_bounds = array<i64: 32, 24>}, {transform_indices = @transform_7, window_bounds = array<i64: 16, 24>}]} {
    %c0 = arith.constant 0 : index
    %c0_0 = arith.constant 0 : index
    %0 = vector.load %arg1[%c0, %c0_0] : memref<16x32xbf16, #tpu.memory_space<vmem>>, vector<16x32xbf16>
    %c0_1 = arith.constant 0 : index
    %c0_2 = arith.constant 0 : index
    %1 = vector.load %arg3[%c0_1, %c0_2] : memref<32x128xbf16, #tpu.memory_space<vmem>>, vector<32x128xbf16>
    %cst = arith.constant dense<0.000000e+00> : vector<16x128xf32>
    %2 = tpu.matmul %0, %1, %cst {dimension_numbers = #tpu.dot_dimension_numbers<[1], [0], [0], [1], [0, 0, 1, 1], [], []>} : vector<16x32xbf16>, vector<32x128xbf16>, vector<16x128xf32> -> vector<16x128xf32>
    %c0_3 = arith.constant 0 : index
    %c0_4 = arith.constant 0 : index
    %3 = vector.load %arg2[%c0_3, %c0_4] : memref<3x128xf32, #tpu.memory_space<vmem>>, vector<1x128xf32>
    %4 = vector.broadcast %3 : vector<1x128xf32> to vector<16x128xf32>
    %5 = arith.addf %2, %4 : vector<16x128xf32>
    %cst_5 = arith.constant 0.000000e+00 : f32
    %6 = vector.broadcast %cst_5 : f32 to vector<16x128xf32>
    %7 = arith.maximumf %5, %6 : vector<16x128xf32>
    %8 = arith.truncf %7 : vector<16x128xf32> to vector<16x128xbf16>
    %c0_6 = arith.constant 0 : index
    %c0_7 = arith.constant 0 : index
    %9 = vector.load %arg4[%c0_6, %c0_7] : memref<128x128xbf16, #tpu.memory_space<vmem>>, vector<128x128xbf16>
    %cst_8 = arith.constant dense<0.000000e+00> : vector<16x128xf32>
    %10 = tpu.matmul %8, %9, %cst_8 {dimension_numbers = #tpu.dot_dimension_numbers<[1], [0], [0], [1], [0, 0, 1, 1], [], []>} : vector<16x128xbf16>, vector<128x128xbf16>, vector<16x128xf32> -> vector<16x128xf32>
    %c0_9 = arith.constant 0 : index
    %c0_10 = arith.constant 0 : index
    %11 = vector.load %arg5[%c0_9, %c0_10] : memref<32x128xbf16, #tpu.memory_space<vmem>>, vector<32x128xbf16>
    %cst_11 = arith.constant dense<0.000000e+00> : vector<16x128xf32>
    %12 = tpu.matmul %0, %11, %cst_11 {dimension_numbers = #tpu.dot_dimension_numbers<[1], [0], [0], [1], [0, 0, 1, 1], [], []>} : vector<16x32xbf16>, vector<32x128xbf16>, vector<16x128xf32> -> vector<16x128xf32>
    %13 = arith.addf %10, %12 : vector<16x128xf32>
    %c1 = arith.constant 1 : index
    %c0_12 = arith.constant 0 : index
    %14 = vector.load %arg2[%c1, %c0_12] : memref<3x128xf32, #tpu.memory_space<vmem>>, vector<1x128xf32>
    %15 = vector.broadcast %14 : vector<1x128xf32> to vector<16x128xf32>
    %16 = arith.addf %13, %15 : vector<16x128xf32>
    %cst_13 = arith.constant 0.000000e+00 : f32
    %17 = vector.broadcast %cst_13 : f32 to vector<16x128xf32>
    %18 = arith.maximumf %16, %17 : vector<16x128xf32>
    %19 = arith.truncf %18 : vector<16x128xf32> to vector<16x128xbf16>
    %c0_14 = arith.constant 0 : index
    %c0_15 = arith.constant 0 : index
    %20 = vector.load %arg6[%c0_14, %c0_15] : memref<128x24xbf16, #tpu.memory_space<vmem>>, vector<128x24xbf16>
    %cst_16 = arith.constant dense<0.000000e+00> : vector<16x24xf32>
    %21 = tpu.matmul %19, %20, %cst_16 {dimension_numbers = #tpu.dot_dimension_numbers<[1], [0], [0], [1], [0, 0, 1, 1], [], []>} : vector<16x128xbf16>, vector<128x24xbf16>, vector<16x24xf32> -> vector<16x24xf32>
    %c0_17 = arith.constant 0 : index
    %c0_18 = arith.constant 0 : index
    %22 = vector.load %arg7[%c0_17, %c0_18] : memref<32x24xbf16, #tpu.memory_space<vmem>>, vector<32x24xbf16>
    %cst_19 = arith.constant dense<0.000000e+00> : vector<16x24xf32>
    %23 = tpu.matmul %0, %22, %cst_19 {dimension_numbers = #tpu.dot_dimension_numbers<[1], [0], [0], [1], [0, 0, 1, 1], [], []>} : vector<16x32xbf16>, vector<32x24xbf16>, vector<16x24xf32> -> vector<16x24xf32>
    %24 = arith.addf %21, %23 : vector<16x24xf32>
    %c2 = arith.constant 2 : index
    %c0_20 = arith.constant 0 : index
    %25 = vector.load %arg2[%c2, %c0_20] : memref<3x128xf32, #tpu.memory_space<vmem>>, vector<1x128xf32>
    %26 = vector.extract_strided_slice %25 {offsets = [0, 0], sizes = [1, 24], strides = [1, 1]} : vector<1x128xf32> to vector<1x24xf32>
    %27 = vector.broadcast %26 : vector<1x24xf32> to vector<16x24xf32>
    %28 = arith.addf %24, %27 : vector<16x24xf32>
    %29 = tpu.iota {dimensions = array<i32: 1>} : vector<1x24xi32>
    %c0_i32 = arith.constant 0 : i32
    %30 = vector.broadcast %c0_i32 : i32 to vector<1x24xi32>
    %31 = arith.cmpi sge, %29, %30 : vector<1x24xi32>
    %c4_i32 = arith.constant 4 : i32
    %32 = vector.broadcast %c4_i32 : i32 to vector<1x24xi32>
    %33 = arith.cmpi slt, %29, %32 : vector<1x24xi32>
    %34 = arith.andi %31, %33 : vector<1x24xi1>
    %c4_i32_21 = arith.constant 4 : i32
    %35 = vector.broadcast %c4_i32_21 : i32 to vector<1x24xi32>
    %36 = arith.cmpi sge, %29, %35 : vector<1x24xi32>
    %c8_i32 = arith.constant 8 : i32
    %37 = vector.broadcast %c8_i32 : i32 to vector<1x24xi32>
    %38 = arith.cmpi slt, %29, %37 : vector<1x24xi32>
    %39 = arith.andi %36, %38 : vector<1x24xi1>
    %40 = arith.ori %34, %39 : vector<1x24xi1>
    %cst_22 = arith.constant 0.000000e+00 : f32
    %41 = vector.broadcast %cst_22 : f32 to vector<16x24xf32>
    %cst_23 = arith.constant 0xFF800000 : f32
    %42 = vector.shape_cast %34 : vector<1x24xi1> to vector<1x24xi1>
    %43 = vector.broadcast %42 : vector<1x24xi1> to vector<16x24xi1>
    %44 = vector.broadcast %cst_23 : f32 to vector<16x24xf32>
    %45 = arith.select %43, %28, %44 : vector<16x24xi1>, vector<16x24xf32>
    %cst_24 = arith.constant dense<0xFF800000> : vector<16xf32>
    %46 = vector.multi_reduction <maximumf>, %45, %cst_24 [1] : vector<16x24xf32> to vector<16xf32>
    %47 = vector.shape_cast %46 : vector<16xf32> to vector<16x1xf32>
    %48 = vector.shape_cast %34 : vector<1x24xi1> to vector<1x24xi1>
    %49 = vector.broadcast %48 : vector<1x24xi1> to vector<16x24xi1>
    %50 = vector.shape_cast %47 : vector<16x1xf32> to vector<16x1xf32>
    %51 = vector.broadcast %50 : vector<16x1xf32> to vector<16x24xf32>
    %52 = arith.select %49, %51, %41 : vector<16x24xi1>, vector<16x24xf32>
    %cst_25 = arith.constant 0xFF800000 : f32
    %53 = vector.shape_cast %39 : vector<1x24xi1> to vector<1x24xi1>
    %54 = vector.broadcast %53 : vector<1x24xi1> to vector<16x24xi1>
    %55 = vector.broadcast %cst_25 : f32 to vector<16x24xf32>
    %56 = arith.select %54, %28, %55 : vector<16x24xi1>, vector<16x24xf32>
    %cst_26 = arith.constant dense<0xFF800000> : vector<16xf32>
    %57 = vector.multi_reduction <maximumf>, %56, %cst_26 [1] : vector<16x24xf32> to vector<16xf32>
    %58 = vector.shape_cast %57 : vector<16xf32> to vector<16x1xf32>
    %59 = vector.shape_cast %39 : vector<1x24xi1> to vector<1x24xi1>
    %60 = vector.broadcast %59 : vector<1x24xi1> to vector<16x24xi1>
    %61 = vector.shape_cast %58 : vector<16x1xf32> to vector<16x1xf32>
    %62 = vector.broadcast %61 : vector<16x1xf32> to vector<16x24xf32>
    %63 = arith.select %60, %62, %52 : vector<16x24xi1>, vector<16x24xf32>
    %64 = arith.subf %28, %63 : vector<16x24xf32>
    %cst_27 = arith.constant 0xFF800000 : f32
    %65 = vector.shape_cast %40 : vector<1x24xi1> to vector<1x24xi1>
    %66 = vector.broadcast %65 : vector<1x24xi1> to vector<16x24xi1>
    %67 = vector.broadcast %cst_27 : f32 to vector<16x24xf32>
    %68 = arith.select %66, %64, %67 : vector<16x24xi1>, vector<16x24xf32>
    %69 = math.exp %68 : vector<16x24xf32>
    %cst_28 = arith.constant 1.000000e+00 : f32
    %70 = vector.broadcast %cst_28 : f32 to vector<16x24xf32>
    %cst_29 = arith.constant 0.000000e+00 : f32
    %71 = vector.shape_cast %34 : vector<1x24xi1> to vector<1x24xi1>
    %72 = vector.broadcast %71 : vector<1x24xi1> to vector<16x24xi1>
    %73 = vector.broadcast %cst_29 : f32 to vector<16x24xf32>
    %74 = arith.select %72, %69, %73 : vector<16x24xi1>, vector<16x24xf32>
    %cst_30 = arith.constant dense<0.000000e+00> : vector<16xf32>
    %75 = vector.multi_reduction <add>, %74, %cst_30 [1] : vector<16x24xf32> to vector<16xf32>
    %76 = vector.shape_cast %75 : vector<16xf32> to vector<16x1xf32>
    %77 = vector.shape_cast %34 : vector<1x24xi1> to vector<1x24xi1>
    %78 = vector.broadcast %77 : vector<1x24xi1> to vector<16x24xi1>
    %79 = vector.shape_cast %76 : vector<16x1xf32> to vector<16x1xf32>
    %80 = vector.broadcast %79 : vector<16x1xf32> to vector<16x24xf32>
    %81 = arith.select %78, %80, %70 : vector<16x24xi1>, vector<16x24xf32>
    %cst_31 = arith.constant 0.000000e+00 : f32
    %82 = vector.shape_cast %39 : vector<1x24xi1> to vector<1x24xi1>
    %83 = vector.broadcast %82 : vector<1x24xi1> to vector<16x24xi1>
    %84 = vector.broadcast %cst_31 : f32 to vector<16x24xf32>
    %85 = arith.select %83, %69, %84 : vector<16x24xi1>, vector<16x24xf32>
    %cst_32 = arith.constant dense<0.000000e+00> : vector<16xf32>
    %86 = vector.multi_reduction <add>, %85, %cst_32 [1] : vector<16x24xf32> to vector<16xf32>
    %87 = vector.shape_cast %86 : vector<16xf32> to vector<16x1xf32>
    %88 = vector.shape_cast %39 : vector<1x24xi1> to vector<1x24xi1>
    %89 = vector.broadcast %88 : vector<1x24xi1> to vector<16x24xi1>
    %90 = vector.shape_cast %87 : vector<16x1xf32> to vector<16x1xf32>
    %91 = vector.broadcast %90 : vector<16x1xf32> to vector<16x24xf32>
    %92 = arith.select %89, %91, %81 : vector<16x24xi1>, vector<16x24xf32>
    %93 = arith.divf %69, %92 : vector<16x24xf32>
    %94 = vector.shape_cast %40 : vector<1x24xi1> to vector<1x24xi1>
    %95 = vector.broadcast %94 : vector<1x24xi1> to vector<16x24xi1>
    %96 = arith.select %95, %93, %28 : vector<16x24xi1>, vector<16x24xf32>
    %c0_33 = arith.constant 0 : index
    %c0_34 = arith.constant 0 : index
    %97 = vector.load %arg8[%c0_33, %c0_34] : memref<16x24xf32, #tpu.memory_space<vmem>>, vector<16x24xf32>
    tpu.vector_store %arg8[%c0_33, %c0_34], %96 {strides = array<i32>} : memref<16x24xf32, #tpu.memory_space<vmem>>, vector<16x24xf32>,
    return
  }
  func.func @transform_0(%arg0: i32) -> (i32, i32) {
    %c0_i32 = arith.constant 0 : i32
    %c0_i32_0 = arith.constant 0 : i32
    return %arg0, %c0_i32 : i32, i32
  }
  func.func @transform_1(%arg0: i32) -> (i32, i32) {
    %c0_i32 = arith.constant 0 : i32
    %c0_i32_0 = arith.constant 0 : i32
    %c0_i32_1 = arith.constant 0 : i32
    return %c0_i32, %c0_i32_0 : i32, i32
  }
  func.func @transform_2(%arg0: i32) -> (i32, i32) {
    %c0_i32 = arith.constant 0 : i32
    %c0_i32_0 = arith.constant 0 : i32
    %c0_i32_1 = arith.constant 0 : i32
    return %c0_i32, %c0_i32_0 : i32, i32
  }
  func.func @transform_3(%arg0: i32) -> (i32, i32) {
    %c0_i32 = arith.constant 0 : i32
    %c0_i32_0 = arith.constant 0 : i32
    %c0_i32_1 = arith.constant 0 : i32
    return %c0_i32, %c0_i32_0 : i32, i32
  }
  func.func @transform_4(%arg0: i32) -> (i32, i32) {
    %c0_i32 = arith.constant 0 : i32
    %c0_i32_0 = arith.constant 0 : i32
    %c0_i32_1 = arith.constant 0 : i32
    return %c0_i32, %c0_i32_0 : i32, i32
  }
  func.func @transform_5(%arg0: i32) -> (i32, i32) {
    %c0_i32 = arith.constant 0 : i32
    %c0_i32_0 = arith.constant 0 : i32
    %c0_i32_1 = arith.constant 0 : i32
    return %c0_i32, %c0_i32_0 : i32, i32
  }
  func.func @transform_6(%arg0: i32) -> (i32, i32) {
    %c0_i32 = arith.constant 0 : i32
    %c0_i32_0 = arith.constant 0 : i32
    %c0_i32_1 = arith.constant 0 : i32
    return %c0_i32, %c0_i32_0 : i32, i32
  }
  func.func @transform_7(%arg0: i32) -> (i32, i32) {
    %c0_i32 = arith.constant 0 : i32
    %c0_i32_0 = arith.constant 0 : i32
    return %arg0, %c0_i32 : i32, i32
  }
}

</mosaic_0001>

<llo_original>
// kernel: tpu_custom_call.1
$region0: #{tpu_custom_call.1}
  #allocation0 [shape = 'u32[]', space=smem, size = 0x4, offset = 0x4, fixed_abs, tag = 'smem constant byte address 0x4 - core index']
  #allocation1 [shape = 'u32[144,128]{1,0:T(1,128)}', space=vmem, size = 0x12000, scoped, tag = 'internal scratch']
  %s0 = inlined_call_operand.hbm [shape: bf16[16,32], index: 0, kind: input, shape index: {}]
  %s1 = inlined_call_operand.hbm [shape: f32[3,128], index: 1, kind: input, shape index: {}]
  %s2 = inlined_call_operand.vmem [shape: bf16[32,128], index: 2, kind: input, shape index: {}]
  %s3 = inlined_call_operand.vmem [shape: bf16[128,128], index: 3, kind: input, shape index: {}]
  %s4 = inlined_call_operand.vmem [shape: bf16[32,128], index: 4, kind: input, shape index: {}]
  %s5 = inlined_call_operand.vmem [shape: bf16[128,24], index: 5, kind: input, shape index: {}]
  %s6 = inlined_call_operand.vmem [shape: bf16[32,24], index: 6, kind: input, shape index: {}]
  %s7 = inlined_call_operand.hbm [shape: f32[16,24], index: 7, kind: output, shape index: {}]
  %s8 = sld [smem:[#allocation0]]
  $region46: #{tpu_custom_call.1} parent=0
    _
  %s10 = ssub.s32 1, %s8
  %s11 = scalar_select 0, %s10, %s8
  $region1: #{tpu_custom_call.1} parent=0
    #allocation2 [shape = 'u8[4096]{0}', space=vmem, size = 0x1000, scoped, tag = 'input window, operand 0, single buffered']
    #allocation3 [shape = 's32[1]{0}', space=sflag, size = 0x4, scoped, tag = 'scoped memory for tpu_custom_call.1']
    #allocation4 [shape = 's32[1]{0}', space=sflag, size = 0x4, scoped, tag = 'scoped memory for tpu_custom_call.1']
    #allocation5 [shape = 'u8[2048]{0}', space=vmem, size = 0x800, scoped, tag = 'input window, operand 1, single buffered']
    #allocation6 [shape = 's32[1]{0}', space=sflag, size = 0x4, scoped, tag = 'scoped memory for tpu_custom_call.1']
    #allocation7 [shape = 'u8[8192]{0}', space=vmem, size = 0x2000, scoped, tag = 'output window, operand 0, single buffered']
    %12 = vsyncpa [#allocation3], 0
    %13 = vsyncpa [#allocation6], 0
    %14 = vsyncpa [#allocation4], 0
    // Predicated region
    $region2: #{tpu_custom_call.1} parent=1 // pred_check
      _
    $region3: #{tpu_custom_call.1} parent=1 // pred_check_branch
      %16 = sbr.rel (0) target = $region5
    $region4: #{tpu_custom_call.1} parent=1 // pred_region
      %s18 = ssub.s32 128, 128
      %19 = vsyncadd [#allocation3], %s18
      %s20 = sshll.u32 [#allocation2], 4
      %s21 = int_to_ptr.vmem [resolvable:$true] %s20
      %26 = dma.hbm_to_vmem [thread:$0]  %s0, 128, %s21, [#allocation3], 64, 64, 4
    $region5: #{tpu_custom_call.1} parent=1 // pred_fallthru
      _
    // Predicated region
    $region6: #{tpu_custom_call.1} parent=1 // pred_check
      _
    $region7: #{tpu_custom_call.1} parent=1 // pred_check_branch
      %28 = sbr.rel (0) target = $region9
    $region8: #{tpu_custom_call.1} parent=1 // pred_region
      %s30 = ssub.s32 64, 64
      %31 = vsyncadd [#allocation6], %s30
      %s33 = sshll.u32 [#allocation5], 4
      %s34 = int_to_ptr.vmem [resolvable:$true] %s33
      %36 = dma.hbm_to_vmem [thread:$0]  %s1, 64, %s34, [#allocation6]
    $region9: #{tpu_custom_call.1} parent=1 // pred_fallthru
      _
    // Predicated region
    $region10: #{tpu_custom_call.1} parent=1 // pred_check
      _
    $region11: #{tpu_custom_call.1} parent=1 // pred_check_branch
      %38 = sbr.rel (0) target = $region13
    $region12: #{tpu_custom_call.1} parent=1 // pred_region
      _
    $region13: #{tpu_custom_call.1} parent=1 // pred_fallthru
      _
    // Predicated region
    $region14: #{tpu_custom_call.1} parent=1 // pred_check
      _
    $region15: #{tpu_custom_call.1} parent=1 // pred_check_branch
      %40 = sbr.rel (0) target = $region17
    $region16: #{tpu_custom_call.1} parent=1 // pred_region
      _
    $region17: #{tpu_custom_call.1} parent=1 // pred_fallthru
      _
    // Predicated region
    $region18: #{tpu_custom_call.1} parent=1 // pred_check
      _
    $region19: #{tpu_custom_call.1} parent=1 // pred_check_branch
      %42 = sbr.rel (0) target = $region21
    $region20: #{tpu_custom_call.1} parent=1 // pred_region
      _
    $region21: #{tpu_custom_call.1} parent=1 // pred_fallthru
      _
    // Predicated region
    $region22: #{tpu_custom_call.1} parent=1 // pred_check
      _
    $region23: #{tpu_custom_call.1} parent=1 // pred_check_branch
      %44 = sbr.rel (0) target = $region25
    $region24: #{tpu_custom_call.1} parent=1 // pred_region
      _
    $region25: #{tpu_custom_call.1} parent=1 // pred_fallthru
      _
    // Predicated region
    $region26: #{tpu_custom_call.1} parent=1 // pred_check
      _
    $region27: #{tpu_custom_call.1} parent=1 // pred_check_branch
      %46 = sbr.rel (0) target = $region29
    $region28: #{tpu_custom_call.1} parent=1 // pred_region
      _
    $region29: #{tpu_custom_call.1} parent=1 // pred_fallthru
      _
    // Predicated region
    $region30: #{tpu_custom_call.1} parent=1 // pred_check
      _
    $region31: #{tpu_custom_call.1} parent=1 // pred_check_branch
      %48 = sbr.rel (0) target = $region33
    $region32: #{tpu_custom_call.1} parent=1 // pred_region
      %49 = dma.done [#allocation3], 128
    $region33: #{tpu_custom_call.1} parent=1 // pred_fallthru
      _
    // Predicated region
    $region34: #{tpu_custom_call.1} parent=1 // pred_check
      _
    $region35: #{tpu_custom_call.1} parent=1 // pred_check_branch
      %51 = sbr.rel (0) target = $region37
    $region36: #{tpu_custom_call.1} parent=1 // pred_region
      %52 = dma.done [#allocation6], 64
    $region37: #{tpu_custom_call.1} parent=1 // pred_fallthru
      _
    %v54 = vld [vmem:[#allocation2] sm:$0xf]
    %v55 = vld [vmem:[#allocation2 + $0x4] sm:$0xf]
    %v56 = vld [vmem:[%s2] sm:$0xf]
    %v57 = vld [vmem:[%s2 + $0x4] sm:$0xf]
    %v58 = vld [vmem:[%s2 + $0x8] sm:$0xf]
    %v59 = vld [vmem:[%s2 + $0xc] sm:$0xf]
    %v60 = vld [vmem:[#allocation5] sm:$0x1]
    %v61 = vlaneseq
    %v62 = vshrl.u32 %v61, 7
    %v63 = vsub.s32 0, %v62
    %v64 = vrot.slane %v60, %v63
    %v67 = vunpack.c.l.b16 %v54
    %v68 = vunpack.c.l.b16 %v55
    %v69 = vpack.c.b16 %v68, %v67
    %v74 = vunpack.c.l.b16 %v56
    %v75 = vunpack.c.l.b16 %v57
    %v76 = vunpack.c.l.b16 %v58
    %v77 = vunpack.c.l.b16 %v59
    %v78 = vpack.c.b16 %v75, %v74
    %v79 = vpack.c.b16 %v77, %v76
    %vm82 = vcmask 261120
    %v84 = vsel %vm82, %v69, 0
    %86 = vmatprep.subr.bf16.mxu0 0
    %87 = vmatpush1.bf16.msra.mxu0 0
    %88 = vmatprep.subr.bf16.mxu0 0
    %89 = vmatpush1.bf16.msra.mxu0 0
    %90 = vmatprep.subr.bf16.mxu0 0
    %91 = vmatpush1.bf16.msra.mxu0 0
    %92 = vmatprep.subr.bf16.mxu0 0
    %93 = vmatpush1.bf16.msra.mxu0 0
    %94 = vmatprep.subr.bf16.mxu0 0
    %95 = vmatpush1.bf16.msra.mxu0 0
    %96 = vmatprep.subr.bf16.mxu0 0
    %97 = vmatpush1.bf16.msra.mxu0 0
    %98 = vmatprep.subr.bf16.mxu0 0
    %99 = vmatpush1.bf16.msra.mxu0 %v79
    %100 = vmatprep.subr.bf16.mxu0 0
    %101 = vmatpush1.bf16.msra.mxu0 %v78
    %102 = vmatprep.subr.bf16.mxu0 0
    %103 = vmatpush2.bf16.msra.mxu0 0
    %104 = vmatprep.subr.bf16.mxu0 0
    %105 = vmatpush2.bf16.msra.mxu0 0
    %106 = vmatprep.subr.bf16.mxu0 0
    %107 = vmatpush2.bf16.msra.mxu0 0
    %108 = vmatprep.subr.bf16.mxu0 0
    %109 = vmatpush2.bf16.msra.mxu0 0
    %110 = vmatprep.subr.bf16.mxu0 0
    %111 = vmatpush2.bf16.msra.mxu0 0
    %112 = vmatprep.subr.bf16.mxu0 0
    %113 = vmatpush2.bf16.msra.mxu0 0
    %114 = vmatprep.subr.bf16.mxu0 0
    %115 = vmatpush2.bf16.msra.mxu0 0
    %116 = vmatprep.subr.bf16.mxu0 0
    %117 = vmatpush2.bf16.msra.mxu0 0
    %118 = vmatprep.mubr.bf16.mxu0 0
    %119 = vmatmul.mubr.bf16.gmra.mxu0 %v84
    %v120 = vpop.f32.mrf.mxu0
    %v121 = vadd.f32 %v64, %v120
    %v122 = vpop.f32.mrf.mxu0
    %v123 = vpop.f32.mrf.mxu0
    %v124 = vadd.f32 %v64, %v123
    %v125 = vpop.f32.mrf.mxu0
    %126 = vdwg.mxu0
    %v127 = vmax.f32 %v121, 0.0
    %v128 = vmax.f32 %v124, 0.0
    %v129 = vpack.c.bf16 %v128, %v127
    %v130 = vld [vmem:[%s3] sm:$0xf]
    %v131 = vld [vmem:[%s3 + $0x4] sm:$0xf]
    %v132 = vld [vmem:[%s3 + $0x8] sm:$0xf]
    %v133 = vld [vmem:[%s3 + $0xc] sm:$0xf]
    %v134 = vld [vmem:[%s3 + $0x10] sm:$0xf]
    %v135 = vld [vmem:[%s3 + $0x14] sm:$0xf]
    %v136 = vld [vmem:[%s3 + $0x18] sm:$0xf]
    %v137 = vld [vmem:[%s3 + $0x1c] sm:$0xf]
    %v138 = vld [vmem:[%s3 + $0x20] sm:$0xf]
    %v139 = vld [vmem:[%s3 + $0x24] sm:$0xf]
    %v140 = vld [vmem:[%s3 + $0x28] sm:$0xf]
    %v141 = vld [vmem:[%s3 + $0x2c] sm:$0xf]
    %v142 = vld [vmem:[%s3 + $0x30] sm:$0xf]
    %v143 = vld [vmem:[%s3 + $0x34] sm:$0xf]
    %v144 = vld [vmem:[%s3 + $0x38] sm:$0xf]
    %v145 = vld [vmem:[%s3 + $0x3c] sm:$0xf]
    %v146 = vld [vmem:[%s4] sm:$0xf]
    %v147 = vld [vmem:[%s4 + $0x4] sm:$0xf]
    %v148 = vld [vmem:[%s4 + $0x8] sm:$0xf]
    %v149 = vld [vmem:[%s4 + $0xc] sm:$0xf]
    %v154 = vunpack.c.l.b16 %v146
    %v155 = vunpack.c.l.b16 %v147
    %v156 = vunpack.c.l.b16 %v148
    %v157 = vunpack.c.l.b16 %v149
    %v158 = vpack.c.b16 %v155, %v154
    %v159 = vpack.c.b16 %v157, %v156
    %162 = vmatprep.subr.bf16.mxu0 0
    %163 = vmatpush1.bf16.msra.mxu0 0
    %164 = vmatprep.subr.bf16.mxu0 0
    %165 = vmatpush1.bf16.msra.mxu0 0
    %166 = vmatprep.subr.bf16.mxu0 0
    %167 = vmatpush1.bf16.msra.mxu0 0
    %168 = vmatprep.subr.bf16.mxu0 0
    %169 = vmatpush1.bf16.msra.mxu0 0
    %170 = vmatprep.subr.bf16.mxu0 0
    %171 = vmatpush1.bf16.msra.mxu0 0
    %172 = vmatprep.subr.bf16.mxu0 0
    %173 = vmatpush1.bf16.msra.mxu0 0
    %174 = vmatprep.subr.bf16.mxu0 0
    %175 = vmatpush1.bf16.msra.mxu0 %v159
    %176 = vmatprep.subr.bf16.mxu0 0
    %177 = vmatpush1.bf16.msra.mxu0 %v158
    %178 = vmatprep.subr.bf16.mxu0 0
    %179 = vmatpush2.bf16.msra.mxu0 0
    %180 = vmatprep.subr.bf16.mxu0 0
    %181 = vmatpush2.bf16.msra.mxu0 0
    %182 = vmatprep.subr.bf16.mxu0 0
    %183 = vmatpush2.bf16.msra.mxu0 0
    %184 = vmatprep.subr.bf16.mxu0 0
    %185 = vmatpush2.bf16.msra.mxu0 0
    %186 = vmatprep.subr.bf16.mxu0 0
    %187 = vmatpush2.bf16.msra.mxu0 0
    %188 = vmatprep.subr.bf16.mxu0 0
    %189 = vmatpush2.bf16.msra.mxu0 0
    %190 = vmatprep.subr.bf16.mxu0 0
    %191 = vmatpush2.bf16.msra.mxu0 0
    %192 = vmatprep.subr.bf16.mxu0 0
    %193 = vmatpush2.bf16.msra.mxu0 0
    %194 = vmatprep.mubr.bf16.mxu0 0
    %195 = vmatmul.mubr.bf16.gmra.mxu0 %v84
    %v196 = vpop.f32.mrf.mxu0
    %v197 = vadd.f32 0.0, %v196
    %v198 = vpop.f32.mrf.mxu0
    %v199 = vpop.f32.mrf.mxu0
    %v200 = vadd.f32 0.0, %v199
    %v201 = vpop.f32.mrf.mxu0
    %202 = vdwg.mxu0
    %v219 = vunpack.c.l.b16 %v130
    %v220 = vunpack.c.l.b16 %v131
    %v221 = vunpack.c.l.b16 %v132
    %v222 = vunpack.c.l.b16 %v133
    %v223 = vunpack.c.l.b16 %v134
    %v224 = vunpack.c.l.b16 %v135
    %v225 = vunpack.c.l.b16 %v136
    %v226 = vunpack.c.l.b16 %v137
    %v227 = vunpack.c.l.b16 %v138
    %v228 = vunpack.c.l.b16 %v139
    %v229 = vunpack.c.l.b16 %v140
    %v230 = vunpack.c.l.b16 %v141
    %v231 = vunpack.c.l.b16 %v142
    %v232 = vunpack.c.l.b16 %v143
    %v233 = vunpack.c.l.b16 %v144
    %v234 = vunpack.c.l.b16 %v145
    %v235 = vpack.c.b16 %v220, %v219
    %v236 = vpack.c.b16 %v222, %v221
    %v237 = vpack.c.b16 %v224, %v223
    %v238 = vpack.c.b16 %v226, %v225
    %v239 = vpack.c.b16 %v228, %v227
    %v240 = vpack.c.b16 %v230, %v229
    %v241 = vpack.c.b16 %v232, %v231
    %v242 = vpack.c.b16 %v234, %v233
    %251 = vmatprep.subr.bf16.mxu0 0
    %252 = vmatpush1.bf16.msra.mxu0 %v242
    %253 = vmatprep.subr.bf16.mxu0 0
    %254 = vmatpush1.bf16.msra.mxu0 %v241
    %255 = vmatprep.subr.bf16.mxu0 0
    %256 = vmatpush1.bf16.msra.mxu0 %v240
    %257 = vmatprep.subr.bf16.mxu0 0
    %258 = vmatpush1.bf16.msra.mxu0 %v239
    %259 = vmatprep.subr.bf16.mxu0 0
    %260 = vmatpush1.bf16.msra.mxu0 %v238
    %261 = vmatprep.subr.bf16.mxu0 0
    %262 = vmatpush1.bf16.msra.mxu0 %v237
    %263 = vmatprep.subr.bf16.mxu0 0
    %264 = vmatpush1.bf16.msra.mxu0 %v236
    %265 = vmatprep.subr.bf16.mxu0 0
    %266 = vmatpush1.bf16.msra.mxu0 %v235
    %267 = vmatprep.subr.bf16.mxu0 0
    %268 = vmatpush2.bf16.msra.mxu0 0
    %269 = vmatprep.subr.bf16.mxu0 0
    %270 = vmatpush2.bf16.msra.mxu0 0
    %271 = vmatprep.subr.bf16.mxu0 0
    %272 = vmatpush2.bf16.msra.mxu0 0
    %273 = vmatprep.subr.bf16.mxu0 0
    %274 = vmatpush2.bf16.msra.mxu0 0
    %275 = vmatprep.subr.bf16.mxu0 0
    %276 = vmatpush2.bf16.msra.mxu0 0
    %277 = vmatprep.subr.bf16.mxu0 0
    %278 = vmatpush2.bf16.msra.mxu0 0
    %279 = vmatprep.subr.bf16.mxu0 0
    %280 = vmatpush2.bf16.msra.mxu0 0
    %281 = vmatprep.subr.bf16.mxu0 0
    %282 = vmatpush2.bf16.msra.mxu0 0
    %283 = vmatprep.mubr.bf16.mxu0 0
    %284 = vmatmul.mubr.bf16.gmra.mxu0 %v129
    %v285 = vpop.f32.mrf.mxu0
    %v286 = vadd.f32 %v197, %v285
    %v287 = vpop.f32.mrf.mxu0
    %v288 = vpop.f32.mrf.mxu0
    %v289 = vadd.f32 %v200, %v288
    %v290 = vpop.f32.mrf.mxu0
    %291 = vdwg.mxu0
    %v292 = vld [vmem:[#allocation5 + $0x1] sm:$0x1]
    %v293 = vlaneseq
    %v294 = vshrl.u32 %v293, 7
    %v295 = vsub.s32 0, %v294
    %v296 = vrot.slane %v292, %v295
    %v297 = vadd.f32 %v286, %v296
    %v298 = vadd.f32 %v289, %v296
    %v299 = vmax.f32 %v297, 0.0
    %v300 = vmax.f32 %v298, 0.0
    %v301 = vpack.c.bf16 %v300, %v299
    %v302 = vld [vmem:[%s5] sm:$0xf]
    %v303 = vld [vmem:[%s5 + $0x4] sm:$0xf]
    %v304 = vld [vmem:[%s5 + $0x8] sm:$0xf]
    %v305 = vld [vmem:[%s5 + $0xc] sm:$0xf]
    %v306 = vld [vmem:[%s5 + $0x10] sm:$0xf]
    %v307 = vld [vmem:[%s5 + $0x14] sm:$0xf]
    %v308 = vld [vmem:[%s5 + $0x18] sm:$0xf]
    %v309 = vld [vmem:[%s5 + $0x1c] sm:$0xf]
    %v310 = vld [vmem:[%s5 + $0x20] sm:$0xf]
    %v311 = vld [vmem:[%s5 + $0x24] sm:$0xf]
    %v312 = vld [vmem:[%s5 + $0x28] sm:$0xf]
    %v313 = vld [vmem:[%s5 + $0x2c] sm:$0xf]
    %v314 = vld [vmem:[%s5 + $0x30] sm:$0xf]
    %v315 = vld [vmem:[%s5 + $0x34] sm:$0xf]
    %v316 = vld [vmem:[%s5 + $0x38] sm:$0xf]
    %v317 = vld [vmem:[%s5 + $0x3c] sm:$0xf]
    %v318 = vld [vmem:[%s6] sm:$0xf]
    %v319 = vld [vmem:[%s6 + $0x4] sm:$0xf]
    %v320 = vld [vmem:[%s6 + $0x8] sm:$0xf]
    %v321 = vld [vmem:[%s6 + $0xc] sm:$0xf]
    %v326 = vunpack.c.l.b16 %v318
    %v327 = vunpack.c.l.b16 %v319
    %v328 = vunpack.c.l.b16 %v320
    %v329 = vunpack.c.l.b16 %v321
    %v330 = vpack.c.b16 %v327, %v326
    %v331 = vpack.c.b16 %v329, %v328
    %334 = vmatprep.subr.bf16.mxu0 0
    %335 = vmatpush1.bf16.msra.mxu0 0
    %336 = vmatprep.subr.bf16.mxu0 0
    %337 = vmatpush1.bf16.msra.mxu0 0
    %338 = vmatprep.subr.bf16.mxu0 0
    %339 = vmatpush1.bf16.msra.mxu0 0
    %340 = vmatprep.subr.bf16.mxu0 0
    %341 = vmatpush1.bf16.msra.mxu0 0
    %342 = vmatprep.subr.bf16.mxu0 0
    %343 = vmatpush1.bf16.msra.mxu0 0
    %344 = vmatprep.subr.bf16.mxu0 0
    %345 = vmatpush1.bf16.msra.mxu0 0
    %346 = vmatprep.subr.bf16.mxu0 0
    %347 = vmatpush1.bf16.msra.mxu0 %v331
    %348 = vmatprep.subr.bf16.mxu0 0
    %349 = vmatpush1.bf16.msra.mxu0 %v330
    %350 = vmatprep.subr.bf16.mxu0 0
    %351 = vmatpush2.bf16.msra.mxu0 0
    %352 = vmatprep.subr.bf16.mxu0 0
    %353 = vmatpush2.bf16.msra.mxu0 0
    %354 = vmatprep.subr.bf16.mxu0 0
    %355 = vmatpush2.bf16.msra.mxu0 0
    %356 = vmatprep.subr.bf16.mxu0 0
    %357 = vmatpush2.bf16.msra.mxu0 0
    %358 = vmatprep.subr.bf16.mxu0 0
    %359 = vmatpush2.bf16.msra.mxu0 0
    %360 = vmatprep.subr.bf16.mxu0 0
    %361 = vmatpush2.bf16.msra.mxu0 0
    %362 = vmatprep.subr.bf16.mxu0 0
    %363 = vmatpush2.bf16.msra.mxu0 0
    %364 = vmatprep.subr.bf16.mxu0 0
    %365 = vmatpush2.bf16.msra.mxu0 0
    %366 = vmatprep.mubr.bf16.mxu0 0
    %367 = vmatmul.mubr.bf16.gmra.mxu0 %v84
    %v368 = vpop.f32.mrf.mxu0
    %v369 = vadd.f32 0.0, %v368
    %v370 = vpop.f32.mrf.mxu0
    %v371 = vpop.f32.mrf.mxu0
    %v372 = vadd.f32 0.0, %v371
    %v373 = vpop.f32.mrf.mxu0
    %374 = vdwg.mxu0
    %v391 = vunpack.c.l.b16 %v302
    %v392 = vunpack.c.l.b16 %v303
    %v393 = vunpack.c.l.b16 %v304
    %v394 = vunpack.c.l.b16 %v305
    %v395 = vunpack.c.l.b16 %v306
    %v396 = vunpack.c.l.b16 %v307
    %v397 = vunpack.c.l.b16 %v308
    %v398 = vunpack.c.l.b16 %v309
    %v399 = vunpack.c.l.b16 %v310
    %v400 = vunpack.c.l.b16 %v311
    %v401 = vunpack.c.l.b16 %v312
    %v402 = vunpack.c.l.b16 %v313
    %v403 = vunpack.c.l.b16 %v314
    %v404 = vunpack.c.l.b16 %v315
    %v405 = vunpack.c.l.b16 %v316
    %v406 = vunpack.c.l.b16 %v317
    %v407 = vpack.c.b16 %v392, %v391
    %v408 = vpack.c.b16 %v394, %v393
    %v409 = vpack.c.b16 %v396, %v395
    %v410 = vpack.c.b16 %v398, %v397
    %v411 = vpack.c.b16 %v400, %v399
    %v412 = vpack.c.b16 %v402, %v401
    %v413 = vpack.c.b16 %v404, %v403
    %v414 = vpack.c.b16 %v406, %v405
    %423 = vmatprep.subr.bf16.mxu0 0
    %424 = vmatpush1.bf16.msra.mxu0 %v414
    %425 = vmatprep.subr.bf16.mxu0 0
    %426 = vmatpush1.bf16.msra.mxu0 %v413
    %427 = vmatprep.subr.bf16.mxu0 0
    %428 = vmatpush1.bf16.msra.mxu0 %v412
    %429 = vmatprep.subr.bf16.mxu0 0
    %430 = vmatpush1.bf16.msra.mxu0 %v411
    %431 = vmatprep.subr.bf16.mxu0 0
    %432 = vmatpush1.bf16.msra.mxu0 %v410
    %433 = vmatprep.subr.bf16.mxu0 0
    %434 = vmatpush1.bf16.msra.mxu0 %v409
    %435 = vmatprep.subr.bf16.mxu0 0
    %436 = vmatpush1.bf16.msra.mxu0 %v408
    %437 = vmatprep.subr.bf16.mxu0 0
    %438 = vmatpush1.bf16.msra.mxu0 %v407
    %439 = vmatprep.subr.bf16.mxu0 0
    %440 = vmatpush2.bf16.msra.mxu0 0
    %441 = vmatprep.subr.bf16.mxu0 0
    %442 = vmatpush2.bf16.msra.mxu0 0
    %443 = vmatprep.subr.bf16.mxu0 0
    %444 = vmatpush2.bf16.msra.mxu0 0
    %445 = vmatprep.subr.bf16.mxu0 0
    %446 = vmatpush2.bf16.msra.mxu0 0
    %447 = vmatprep.subr.bf16.mxu0 0
    %448 = vmatpush2.bf16.msra.mxu0 0
    %449 = vmatprep.subr.bf16.mxu0 0
    %450 = vmatpush2.bf16.msra.mxu0 0
    %451 = vmatprep.subr.bf16.mxu0 0
    %452 = vmatpush2.bf16.msra.mxu0 0
    %453 = vmatprep.subr.bf16.mxu0 0
    %454 = vmatpush2.bf16.msra.mxu0 0
    %455 = vmatprep.mubr.bf16.mxu0 0
    %456 = vmatmul.mubr.bf16.gmra.mxu0 %v301
    %v457 = vpop.f32.mrf.mxu0
    %v458 = vadd.f32 %v369, %v457
    %v459 = vpop.f32.mrf.mxu0
    %v460 = vpop.f32.mrf.mxu0
    %v461 = vadd.f32 %v372, %v460
    %v462 = vpop.f32.mrf.mxu0
    %463 = vdwg.mxu0
    %v464 = vld [vmem:[#allocation5 + $0x2] sm:$0x1]
    %v465 = vlaneseq
    %v466 = vshrl.u32 %v465, 7
    %v467 = vsub.s32 0, %v466
    %v468 = vrot.slane %v464, %v467
    %v469 = vadd.f32 %v458, %v468
    %v470 = vadd.f32 %v461, %v468
    %v471 = vlaneseq
    %v472 = vand.u32 %v471, 127
    %vm473 = vcmp.ge.s32.totalorder %v472, 0
    %vm474 = vcmp.lt.s32.totalorder %v472, 4
    %vm475 = vmand %vm473, %vm474
    %vm476 = vcmp.ge.s32.totalorder %v472, 4
    %vm477 = vcmp.lt.s32.totalorder %v472, 8
    %vm478 = vmand %vm476, %vm477
    %vm479 = vmor %vm475, %vm478
    %v480 = vsel %vm475, 1, 0
    %vm481 = vcmp.eq.s32.totalorder %v480, 1
    %v482 = vsel %vm481, %v469, -inf
    %v483 = vsel %vm481, %v470, -inf
    %vm484 = vcmask 195584
    %v485 = vsel %vm484, %v482, -inf
    %486 = vmax.xlane.f32.xlu0 %v485
    %v487 = vpop.xlane.xlu0 %486
    %v488 = vsel %vm484, %v483, -inf
    %489 = vmax.xlane.f32.xlu0 %v488
    %v490 = vpop.xlane.xlu0 %489
    %v491 = vsel %vm481, %v487, 0.0
    %v492 = vsel %vm481, %v490, 0.0
    %v493 = vsel %vm478, 1, 0
    %vm494 = vcmp.eq.s32.totalorder %v493, 1
    %v495 = vsel %vm494, %v469, -inf
    %v496 = vsel %vm494, %v470, -inf
    %v497 = vsel %vm484, %v495, -inf
    %498 = vmax.xlane.f32.xlu0 %v497
    %v499 = vpop.xlane.xlu0 %498
    %v500 = vsel %vm484, %v496, -inf
    %501 = vmax.xlane.f32.xlu0 %v500
    %v502 = vpop.xlane.xlu0 %501
    %v503 = vsel %vm494, %v499, %v491
    %v504 = vsel %vm494, %v502, %v492
    %v505 = vsub.f32 %v469, %v503
    %v506 = vsub.f32 %v470, %v504
    %v507 = vsel %vm479, 1, 0
    %vm508 = vcmp.eq.s32.totalorder %v507, 1
    %v509 = vsel %vm508, %v505, -inf
    %v510 = vsel %vm508, %v506, -inf
    %v511 = vmul.f32 %v509, 1.442695
    %v512 = vpow.pop %v511
    %v513 = vmul.f32 %v510, 1.442695
    %v514 = vpow.pop %v513
    %v515 = vsel %vm481, %v512, 0.0
    %v516 = vsel %vm481, %v514, 0.0
    %v517 = vsel %vm484, %v515, 0.0
    %518 = vadd.xlane.f32.xlu0 %v517
    %v519 = vpop.xlane.xlu0 %518
    %v520 = vsel %vm484, %v516, 0.0
    %521 = vadd.xlane.f32.xlu0 %v520
    %v522 = vpop.xlane.xlu0 %521
    %v523 = vsel %vm481, %v519, 1.0
    %v524 = vsel %vm481, %v522, 1.0
    %v525 = vsel %vm494, %v512, 0.0
    %v526 = vsel %vm494, %v514, 0.0
    %v527 = vsel %vm484, %v525, 0.0
    %528 = vadd.xlane.f32.xlu0 %v527
    %v529 = vpop.xlane.xlu0 %528
    %v530 = vsel %vm484, %v526, 0.0
    %531 = vadd.xlane.f32.xlu0 %v530
    %v532 = vpop.xlane.xlu0 %531
    %v533 = vsel %vm494, %v529, %v523
    %v534 = vsel %vm494, %v532, %v524
    %v535 = vrcp.pop %v533
    %v536 = vmul.f32 %v512, %v535
    %v537 = vrcp.pop %v534
    %v538 = vmul.f32 %v514, %v537
    %v539 = vsel %vm508, %v536, %v469
    %v540 = vsel %vm508, %v538, %v470
    %541 = vst.msk [vmem:[#allocation7] sm:$0xff] %vm484, %v539
    %542 = vst.msk [vmem:[#allocation7 + $0x8] sm:$0xff] %vm484, %v540
    // Predicated region
    $region38: #{tpu_custom_call.1} parent=1 // pred_check
      _
    $region39: #{tpu_custom_call.1} parent=1 // pred_check_branch
      %544 = sbr.rel (0) target = $region41
    $region40: #{tpu_custom_call.1} parent=1 // pred_region
      %s546 = ssub.s32 256, 256
      %547 = vsyncadd [#allocation4], %s546
      %s548 = sshll.u32 [#allocation7], 4
      %s549 = int_to_ptr.vmem [resolvable:$true] %s548
      %554 = dma.vmem_to_hbm [thread:$0]  %s549, 256, %s7, [#allocation4], 128, 128, 8
    $region41: #{tpu_custom_call.1} parent=1 // pred_fallthru
      _
    // Predicated region
    $region42: #{tpu_custom_call.1} parent=1 // pred_check
      _
    $region43: #{tpu_custom_call.1} parent=1 // pred_check_branch
      %556 = sbr.rel (0) target = $region45
    $region44: #{tpu_custom_call.1} parent=1 // pred_region
      %557 = dma.done [#allocation4], 256
    $region45: #{tpu_custom_call.1} parent=1 // pred_fallthru
      _
    %558 = vsyncpa [#allocation3], 1
    %559 = vsyncpa [#allocation6], 1
    %560 = vsyncpa [#allocation4], 1

</llo_original>
